<compile_context>
chip_gen: v5e
topology: v5e:2x2
jax: 0.10.0
libtpu: 0.0.40
codegen_flags: <defaults>
</compile_context>

<pallas_src>
import jax
import jax.numpy as jnp
from jax.experimental import pallas as pl
from jax.experimental.pallas import tpu as pltpu

HIDDEN = 256
OUT_LANES = 128          # lane-dense output block: q1 -> lane 0, q2 -> lane 1


def _round_up(x, m):
    return ((x + m - 1) // m) * m


_NUM_TC_CACHE = None


def _num_tensorcores():
    """Best-effort TensorCores per chip (2 on v7x, 1 on v5e/v6e)."""
    global _NUM_TC_CACHE
    if _NUM_TC_CACHE is None:
        try:
            kind = jax.devices()[0].device_kind.lower()
            _NUM_TC_CACHE = 2 if ("v7" in kind or "7x" in kind) else 1
        except Exception:
            _NUM_TC_CACHE = 1
    return _NUM_TC_CACHE


# ----------------------------------------------------------------------------
# Kernel
# ----------------------------------------------------------------------------
def _critic_kernel(s_ref, a_ref,
                   wfs_ref, wfa_ref, bf_ref,      # fused first layer (both heads)
                   w2_ref, b2_ref,                # head-1 layer 2
                   w5_ref, b5_ref,                # head-2 layer 2
                   w3p_ref, w6p_ref, bout_ref,    # packed [256,128] output layers
                   q_ref):
    bf16 = jnp.bfloat16
    f32 = jnp.float32

    # Fused first layer of both heads: state-part + action-part, N = 512.
    s_bf = s_ref[...].astype(bf16)
    a_bf = a_ref[...].astype(bf16)
    y = (jnp.dot(s_bf, wfs_ref[...], preferred_element_type=f32)
         + jnp.dot(a_bf, wfa_ref[...], preferred_element_type=f32)
         + bf_ref[...])
    y = jnp.maximum(y, 0.0)                                   # [tB, 512] f32

    # Split at the 256-lane boundary (layout clean, no copy).
    h = y[:, :HIDDEN].astype(bf16)                            # head 1
    g = y[:, HIDDEN:].astype(bf16)                            # head 2

    # Second layers (f32 accumulation, f32 bias + ReLU).
    h2 = jnp.maximum(
        jnp.dot(h, w2_ref[...], preferred_element_type=f32) + b2_ref[...], 0.0)
    g2 = jnp.maximum(
        jnp.dot(g, w5_ref[...], preferred_element_type=f32) + b5_ref[...], 0.0)

    # Packed output layer: single lane-dense [tB, 128] store (q1 | q2 | 0...).
    q_ref[...] = (
        jnp.dot(h2.astype(bf16), w3p_ref[...], preferred_element_type=f32)
        + jnp.dot(g2.astype(bf16), w6p_ref[...], preferred_element_type=f32)
        + bout_ref[...])


# ----------------------------------------------------------------------------
# Parameter init (PyTorch nn.Linear-equivalent, f32, [in, out] layout)
# ----------------------------------------------------------------------------
def init_critic_params(key, state_dim, action_dim, hidden=HIDDEN):
    in_dim = state_dim + action_dim
    dims = [(in_dim, hidden), (hidden, hidden), (hidden, 1),
            (in_dim, hidden), (hidden, hidden), (hidden, 1)]
    params = {}
    keys = jax.random.split(key, 2 * len(dims))
    for i, (din, dout) in enumerate(dims):
        bound = 1.0 / jnp.sqrt(jnp.float32(din))
        params[f"w{i + 1}"] = jax.random.uniform(
            keys[2 * i], (din, dout), jnp.float32, -bound, bound)
        params[f"b{i + 1}"] = jax.random.uniform(
            keys[2 * i + 1], (1, dout), jnp.float32, -bound, bound)
    return params


def pack_critic_params(params, state_dim, weight_dtype=jnp.bfloat16):
    """One-time packing: fuse head-1/head-2 first layers, split state/action
    slices of the first-layer weight, pack the two N=1 output layers into
    zero-padded [256, 128] lane-dense projections. Weights -> bf16, biases f32.
    """
    # TODO(synk): optional int8 (v5e/v6e) / fp8 (v7x) weight quantization path.
    w1, w4 = params["w1"], params["w4"]
    wfs = jnp.concatenate([w1[:state_dim], w4[:state_dim]], axis=1).astype(weight_dtype)
    wfa = jnp.concatenate([w1[state_dim:], w4[state_dim:]], axis=1).astype(weight_dtype)
    bf = jnp.concatenate([params["b1"], params["b4"]], axis=1).astype(jnp.float32)

    # q1 -> lane 0, q2 -> lane 1, remaining 126 lanes zero (unmasked store).
    w3p = jnp.concatenate(
        [params["w3"], jnp.zeros((HIDDEN, OUT_LANES - 1), jnp.float32)],
        axis=1).astype(weight_dtype)
    w6p = jnp.concatenate(
        [jnp.zeros((HIDDEN, 1), jnp.float32), params["w6"],
         jnp.zeros((HIDDEN, OUT_LANES - 2), jnp.float32)],
        axis=1).astype(weight_dtype)
    bout = jnp.concatenate(
        [params["b3"], params["b6"], jnp.zeros((1, OUT_LANES - 2), jnp.float32)],
        axis=1).astype(jnp.float32)

    return dict(
        wfs=wfs, wfa=wfa, bf=bf,
        w2=params["w2"].astype(weight_dtype), b2=params["b2"].astype(jnp.float32),
        w5=params["w5"].astype(weight_dtype), b5=params["b5"].astype(jnp.float32),
        w3p=w3p, w6p=w6p, bout=bout)


# ----------------------------------------------------------------------------
# VMEM budget (explicit scoped limit so big single tiles work on v5e too)
# ----------------------------------------------------------------------------
def _vmem_limit_bytes(tile_b, in_dim, const_arrays):
    weight_bytes = sum(int(a.size) * a.dtype.itemsize for a in const_arrays)
    act_in = tile_b * in_dim * 4
    act_out = tile_b * OUT_LANES * 4
    pipelined = 2 * (weight_bytes + act_in + act_out)      # double-buffered blocks
    interm = tile_b * (2 * HIDDEN) * (4 + 2)               # y f32 + bf16 halves
    interm += 2 * tile_b * HIDDEN * (4 + 2)                # h2/g2 f32 + bf16 casts
    interm += tile_b * OUT_LANES * 4
    total = pipelined + interm + (8 << 20)                 # compiler scratch headroom
    return int(min(max(total, 32 << 20), 64 << 20))        # safe on v5e/v6e/v7x


# ----------------------------------------------------------------------------
# Forward wrapper
# ----------------------------------------------------------------------------
def critic_forward(state, action, packed, *, max_batch_tile=2048,
                   num_tensorcores=None):
    """Equivalent of Critic.forward(state, action) -> (q1, q2)."""
    B, state_dim = state.shape
    action_dim = action.shape[1]
    in_dim = state_dim + action_dim
    if num_tensorcores is None:
        num_tensorcores = _num_tensorcores()

    max_tile = max(16, max_batch_tile - max_batch_tile % 16)

    if B <= max_tile:
        if num_tensorcores > 1 and B >= 256:
            # Two parallel tiles -> both v7x TensorCores do half the batch.
            tile_b = _round_up(pl.cdiv(B, num_tensorcores), 16)
        else:
            # Single-step grid on 1-TC chips: no per-step overhead.
            tile_b = max(16, _round_up(B, 16))
    else:
        # Prefer a multiple-of-16 tile that divides B to avoid a whole-array pad.
        tile_b = None
        for t in range(max_tile, 15, -16):
            if B % t == 0:
                tile_b = t
                break
        if tile_b is None:
            tile_b = max_tile           # fallback: pad only the last partial tile

    pB = _round_up(B, tile_b)
    if pB != B:
        pad = pB - B
        state = jnp.pad(state, ((0, pad), (0, 0)))
        action = jnp.pad(action, ((0, pad), (0, 0)))

    grid = (pB // tile_b,)

    def const_spec(arr):
        # Constant block index -> Pallas skips re-DMA across grid steps.
        return pl.BlockSpec(arr.shape, lambda i: (0, 0))

    ordered = [packed[k] for k in
               ("wfs", "wfa", "bf", "w2", "b2", "w5", "b5", "w3p", "w6p", "bout")]

    in_specs = [pl.BlockSpec((tile_b, state_dim), lambda i: (i, 0)),
                pl.BlockSpec((tile_b, action_dim), lambda i: (i, 0))]
    in_specs += [const_spec(a) for a in ordered]
    out_specs = pl.BlockSpec((tile_b, OUT_LANES), lambda i: (i, 0))

    flops = 2 * pB * (in_dim * 2 * HIDDEN + 2 * HIDDEN * HIDDEN
                      + 2 * HIDDEN * OUT_LANES)
    weight_bytes = sum(int(a.size) * a.dtype.itemsize for a in ordered)
    bytes_accessed = weight_bytes + pB * (in_dim + OUT_LANES) * 4
    cost = pl.CostEstimate(flops=flops, transcendentals=0,
                           bytes_accessed=bytes_accessed)

    q12 = pl.pallas_call(
        _critic_kernel,
        out_shape=jax.ShapeDtypeStruct((pB, OUT_LANES), jnp.float32),
        grid=grid,
        in_specs=in_specs,
        out_specs=out_specs,
        compiler_params=pltpu.CompilerParams(
            dimension_semantics=("parallel",),
            vmem_limit_bytes=_vmem_limit_bytes(tile_b, in_dim, ordered)),
        cost_estimate=cost,
    )(state, action, *ordered)

    return q12[:B, 0:1], q12[:B, 1:2]


# ----------------------------------------------------------------------------
# References
# ----------------------------------------------------------------------------
def critic_forward_ref_f32(state, action, params):
    """Pure-f32 reference matching the PyTorch module exactly."""
    sa = jnp.concatenate([state, action], axis=1)
    h = jnp.maximum(sa @ params["w1"] + params["b1"], 0.0)
    h = jnp.maximum(h @ params["w2"] + params["b2"], 0.0)
    q1 = h @ params["w3"] + params["b3"]
    g = jnp.maximum(sa @ params["w4"] + params["b4"], 0.0)
    g = jnp.maximum(g @ params["w5"] + params["b5"], 0.0)
    q2 = g @ params["w6"] + params["b6"]
    return q1, q2


def critic_forward_ref_packed(state, action, packed):
    """Mirrors the kernel's bf16-weight / f32-accumulation math in plain JAX."""
    bf16, f32 = jnp.bfloat16, jnp.float32

    def dotf(x, w):
        return jnp.dot(x.astype(f32), w.astype(f32))

    y = (dotf(state.astype(bf16), packed["wfs"])
         + dotf(action.astype(bf16), packed["wfa"]) + packed["bf"])
    y = jnp.maximum(y, 0.0)
    h = y[:, :HIDDEN].astype(bf16)
    g = y[:, HIDDEN:].astype(bf16)
    h2 = jnp.maximum(dotf(h, packed["w2"]) + packed["b2"], 0.0)
    g2 = jnp.maximum(dotf(g, packed["w5"]) + packed["b5"], 0.0)
    q12 = (dotf(h2.astype(bf16), packed["w3p"])
           + dotf(g2.astype(bf16), packed["w6p"]) + packed["bout"])
    return q12[:, 0:1], q12[:, 1:2]


# ----------------------------------------------------------------------------
# Test
# ----------------------------------------------------------------------------
if __name__ == "__main__":
    key = jax.random.PRNGKey(0)
    k_state, k_action, k_params = jax.random.split(key, 3)

    batch, state_dim, action_dim = 2, 8, 4

    state = jax.random.normal(k_state, (batch, state_dim), jnp.float32)
    action = jax.random.normal(k_action, (batch, action_dim), jnp.float32)

    params = init_critic_params(k_params, state_dim, action_dim)
    packed = pack_critic_params(params, state_dim)   # one-time packing

    q1, q2 = critic_forward(state, action, packed)
    jax.block_until_ready((q1, q2))
    assert q1.shape == (batch, 1) and q2.shape == (batch, 1)

    # Tight check vs. a reference that mirrors the kernel's bf16/f32 math.
    q1_p, q2_p = critic_forward_ref_packed(state, action, packed)
    assert jnp.allclose(q1, q1_p, atol=1e-4, rtol=1e-4)
    assert jnp.allclose(q2, q2_p, atol=1e-4, rtol=1e-4)

    # Loose check vs. the pure-f32 PyTorch-equivalent reference
    # (difference is only bf16 weight/activation rounding).
    q1_f, q2_f = critic_forward_ref_f32(state, action, params)
    assert jnp.allclose(q1, q1_f, atol=3e-2, rtol=5e-2)
    assert jnp.allclose(q2, q2_f, atol=3e-2, rtol=5e-2)

    print("KERNEL_OK")
</pallas_src>

<mosaic_0001>
module attributes {stable_mosaic.version = 11 : i64} {
  func.func @_critic_kernel(%arg0: i32, %arg1: memref<16x8xf32, #tpu.memory_space<vmem>>, %arg2: memref<16x4xf32, #tpu.memory_space<vmem>>, %arg3: memref<8x512xbf16, #tpu.memory_space<vmem>>, %arg4: memref<4x512xbf16, #tpu.memory_space<vmem>>, %arg5: memref<1x512xf32, #tpu.memory_space<vmem>>, %arg6: memref<256x256xbf16, #tpu.memory_space<vmem>>, %arg7: memref<1x256xf32, #tpu.memory_space<vmem>>, %arg8: memref<256x256xbf16, #tpu.memory_space<vmem>>, %arg9: memref<1x256xf32, #tpu.memory_space<vmem>>, %arg10: memref<256x128xbf16, #tpu.memory_space<vmem>>, %arg11: memref<256x128xbf16, #tpu.memory_space<vmem>>, %arg12: memref<1x128xf32, #tpu.memory_space<vmem>>, %arg13: memref<16x128xf32, #tpu.memory_space<vmem>>) attributes {dimension_semantics = [#tpu.dimension_semantics<parallel>], iteration_bounds = array<i64: 1>, scalar_prefetch = 0 : i64, scratch_operands = 0 : i64, tpu.core_type = #tpu.core_type<tc>, window_params = [{transform_indices = @transform_0, window_bounds = array<i64: 16, 8>}, {transform_indices = @transform_1, window_bounds = array<i64: 16, 4>}, {pipeline_mode = #tpu.pipeline_mode<synchronous>, transform_indices = @transform_2, window_bounds = array<i64: 8, 512>}, {pipeline_mode = #tpu.pipeline_mode<synchronous>, transform_indices = @transform_3, window_bounds = array<i64: 4, 512>}, {pipeline_mode = #tpu.pipeline_mode<synchronous>, transform_indices = @transform_4, window_bounds = array<i64: 1, 512>}, {pipeline_mode = #tpu.pipeline_mode<synchronous>, transform_indices = @transform_5, window_bounds = array<i64: 256, 256>}, {pipeline_mode = #tpu.pipeline_mode<synchronous>, transform_indices = @transform_6, window_bounds = array<i64: 1, 256>}, {pipeline_mode = #tpu.pipeline_mode<synchronous>, transform_indices = @transform_7, window_bounds = array<i64: 256, 256>}, {pipeline_mode = #tpu.pipeline_mode<synchronous>, transform_indices = @transform_8, window_bounds = array<i64: 1, 256>}, {pipeline_mode = #tpu.pipeline_mode<synchronous>, transform_indices = @transform_9, window_bounds = array<i64: 256, 128>}, {pipeline_mode = #tpu.pipeline_mode<synchronous>, transform_indices = @transform_10, window_bounds = array<i64: 256, 128>}, {pipeline_mode = #tpu.pipeline_mode<synchronous>, transform_indices = @transform_11, window_bounds = array<i64: 1, 128>}, {transform_indices = @transform_12, window_bounds = array<i64: 16, 128>}]} {
    %c0 = arith.constant 0 : index
    %c0_0 = arith.constant 0 : index
    %0 = vector.load %arg1[%c0, %c0_0] : memref<16x8xf32, #tpu.memory_space<vmem>>, vector<16x8xf32>
    %1 = arith.truncf %0 : vector<16x8xf32> to vector<16x8xbf16>
    %c0_1 = arith.constant 0 : index
    %c0_2 = arith.constant 0 : index
    %2 = vector.load %arg2[%c0_1, %c0_2] : memref<16x4xf32, #tpu.memory_space<vmem>>, vector<16x4xf32>
    %3 = arith.truncf %2 : vector<16x4xf32> to vector<16x4xbf16>
    %c0_3 = arith.constant 0 : index
    %c0_4 = arith.constant 0 : index
    %4 = vector.load %arg3[%c0_3, %c0_4] : memref<8x512xbf16, #tpu.memory_space<vmem>>, vector<8x512xbf16>
    %cst = arith.constant dense<0.000000e+00> : vector<16x512xf32>
    %5 = tpu.matmul %1, %4, %cst {dimension_numbers = #tpu.dot_dimension_numbers<[1], [0], [0], [1], [0, 0, 1, 1], [], []>} : vector<16x8xbf16>, vector<8x512xbf16>, vector<16x512xf32> -> vector<16x512xf32>
    %c0_5 = arith.constant 0 : index
    %c0_6 = arith.constant 0 : index
    %6 = vector.load %arg4[%c0_5, %c0_6] : memref<4x512xbf16, #tpu.memory_space<vmem>>, vector<4x512xbf16>
    %cst_7 = arith.constant dense<0.000000e+00> : vector<16x512xf32>
    %7 = tpu.matmul %3, %6, %cst_7 {dimension_numbers = #tpu.dot_dimension_numbers<[1], [0], [0], [1], [0, 0, 1, 1], [], []>} : vector<16x4xbf16>, vector<4x512xbf16>, vector<16x512xf32> -> vector<16x512xf32>
    %8 = arith.addf %5, %7 : vector<16x512xf32>
    %c0_8 = arith.constant 0 : index
    %c0_9 = arith.constant 0 : index
    %9 = vector.load %arg5[%c0_8, %c0_9] : memref<1x512xf32, #tpu.memory_space<vmem>>, vector<1x512xf32>
    %10 = vector.broadcast %9 : vector<1x512xf32> to vector<16x512xf32>
    %11 = arith.addf %8, %10 : vector<16x512xf32>
    %cst_10 = arith.constant 0.000000e+00 : f32
    %12 = vector.broadcast %cst_10 : f32 to vector<16x512xf32>
    %13 = arith.maximumf %11, %12 : vector<16x512xf32>
    %14 = vector.extract_strided_slice %13 {offsets = [0, 0], sizes = [16, 256], strides = [1, 1]} : vector<16x512xf32> to vector<16x256xf32>
    %15 = arith.truncf %14 : vector<16x256xf32> to vector<16x256xbf16>
    %16 = vector.extract_strided_slice %13 {offsets = [0, 256], sizes = [16, 256], strides = [1, 1]} : vector<16x512xf32> to vector<16x256xf32>
    %17 = arith.truncf %16 : vector<16x256xf32> to vector<16x256xbf16>
    %c0_11 = arith.constant 0 : index
    %c0_12 = arith.constant 0 : index
    %18 = vector.load %arg6[%c0_11, %c0_12] : memref<256x256xbf16, #tpu.memory_space<vmem>>, vector<256x256xbf16>
    %cst_13 = arith.constant dense<0.000000e+00> : vector<16x256xf32>
    %19 = tpu.matmul %15, %18, %cst_13 {dimension_numbers = #tpu.dot_dimension_numbers<[1], [0], [0], [1], [0, 0, 1, 1], [], []>} : vector<16x256xbf16>, vector<256x256xbf16>, vector<16x256xf32> -> vector<16x256xf32>
    %c0_14 = arith.constant 0 : index
    %c0_15 = arith.constant 0 : index
    %20 = vector.load %arg7[%c0_14, %c0_15] : memref<1x256xf32, #tpu.memory_space<vmem>>, vector<1x256xf32>
    %21 = vector.broadcast %20 : vector<1x256xf32> to vector<16x256xf32>
    %22 = arith.addf %19, %21 : vector<16x256xf32>
    %cst_16 = arith.constant 0.000000e+00 : f32
    %23 = vector.broadcast %cst_16 : f32 to vector<16x256xf32>
    %24 = arith.maximumf %22, %23 : vector<16x256xf32>
    %c0_17 = arith.constant 0 : index
    %c0_18 = arith.constant 0 : index
    %25 = vector.load %arg8[%c0_17, %c0_18] : memref<256x256xbf16, #tpu.memory_space<vmem>>, vector<256x256xbf16>
    %cst_19 = arith.constant dense<0.000000e+00> : vector<16x256xf32>
    %26 = tpu.matmul %17, %25, %cst_19 {dimension_numbers = #tpu.dot_dimension_numbers<[1], [0], [0], [1], [0, 0, 1, 1], [], []>} : vector<16x256xbf16>, vector<256x256xbf16>, vector<16x256xf32> -> vector<16x256xf32>
    %c0_20 = arith.constant 0 : index
    %c0_21 = arith.constant 0 : index
    %27 = vector.load %arg9[%c0_20, %c0_21] : memref<1x256xf32, #tpu.memory_space<vmem>>, vector<1x256xf32>
    %28 = vector.broadcast %27 : vector<1x256xf32> to vector<16x256xf32>
    %29 = arith.addf %26, %28 : vector<16x256xf32>
    %cst_22 = arith.constant 0.000000e+00 : f32
    %30 = vector.broadcast %cst_22 : f32 to vector<16x256xf32>
    %31 = arith.maximumf %29, %30 : vector<16x256xf32>
    %32 = arith.truncf %24 : vector<16x256xf32> to vector<16x256xbf16>
    %c0_23 = arith.constant 0 : index
    %c0_24 = arith.constant 0 : index
    %33 = vector.load %arg10[%c0_23, %c0_24] : memref<256x128xbf16, #tpu.memory_space<vmem>>, vector<256x128xbf16>
    %cst_25 = arith.constant dense<0.000000e+00> : vector<16x128xf32>
    %34 = tpu.matmul %32, %33, %cst_25 {dimension_numbers = #tpu.dot_dimension_numbers<[1], [0], [0], [1], [0, 0, 1, 1], [], []>} : vector<16x256xbf16>, vector<256x128xbf16>, vector<16x128xf32> -> vector<16x128xf32>
    %35 = arith.truncf %31 : vector<16x256xf32> to vector<16x256xbf16>
    %c0_26 = arith.constant 0 : index
    %c0_27 = arith.constant 0 : index
    %36 = vector.load %arg11[%c0_26, %c0_27] : memref<256x128xbf16, #tpu.memory_space<vmem>>, vector<256x128xbf16>
    %cst_28 = arith.constant dense<0.000000e+00> : vector<16x128xf32>
    %37 = tpu.matmul %35, %36, %cst_28 {dimension_numbers = #tpu.dot_dimension_numbers<[1], [0], [0], [1], [0, 0, 1, 1], [], []>} : vector<16x256xbf16>, vector<256x128xbf16>, vector<16x128xf32> -> vector<16x128xf32>
    %38 = arith.addf %34, %37 : vector<16x128xf32>
    %c0_29 = arith.constant 0 : index
    %c0_30 = arith.constant 0 : index
    %39 = vector.load %arg12[%c0_29, %c0_30] : memref<1x128xf32, #tpu.memory_space<vmem>>, vector<1x128xf32>
    %40 = vector.broadcast %39 : vector<1x128xf32> to vector<16x128xf32>
    %41 = arith.addf %38, %40 : vector<16x128xf32>
    %c0_31 = arith.constant 0 : index
    %c0_32 = arith.constant 0 : index
    %42 = vector.load %arg13[%c0_31, %c0_32] : memref<16x128xf32, #tpu.memory_space<vmem>>, vector<16x128xf32>
    tpu.vector_store %arg13[%c0_31, %c0_32], %41 {strides = array<i32>} : memref<16x128xf32, #tpu.memory_space<vmem>>, vector<16x128xf32>,
    return
  }
  func.func @transform_0(%arg0: i32) -> (i32, i32) {
    %c0_i32 = arith.constant 0 : i32
    %c0_i32_0 = arith.constant 0 : i32
    return %arg0, %c0_i32 : i32, i32
  }
  func.func @transform_1(%arg0: i32) -> (i32, i32) {
    %c0_i32 = arith.constant 0 : i32
    %c0_i32_0 = arith.constant 0 : i32
    return %arg0, %c0_i32 : i32, i32
  }
  func.func @transform_2(%arg0: i32) -> (i32, i32) {
    %c0_i32 = arith.constant 0 : i32
    %c0_i32_0 = arith.constant 0 : i32
    %c0_i32_1 = arith.constant 0 : i32
    return %c0_i32, %c0_i32_0 : i32, i32
  }
  func.func @transform_3(%arg0: i32) -> (i32, i32) {
    %c0_i32 = arith.constant 0 : i32
    %c0_i32_0 = arith.constant 0 : i32
    %c0_i32_1 = arith.constant 0 : i32
    return %c0_i32, %c0_i32_0 : i32, i32
  }
  func.func @transform_4(%arg0: i32) -> (i32, i32) {
    %c0_i32 = arith.constant 0 : i32
    %c0_i32_0 = arith.constant 0 : i32
    %c0_i32_1 = arith.constant 0 : i32
    return %c0_i32, %c0_i32_0 : i32, i32
  }
  func.func @transform_5(%arg0: i32) -> (i32, i32) {
    %c0_i32 = arith.constant 0 : i32
    %c0_i32_0 = arith.constant 0 : i32
    %c0_i32_1 = arith.constant 0 : i32
    return %c0_i32, %c0_i32_0 : i32, i32
  }
  func.func @transform_6(%arg0: i32) -> (i32, i32) {
    %c0_i32 = arith.constant 0 : i32
    %c0_i32_0 = arith.constant 0 : i32
    %c0_i32_1 = arith.constant 0 : i32
    return %c0_i32, %c0_i32_0 : i32, i32
  }
  func.func @transform_7(%arg0: i32) -> (i32, i32) {
    %c0_i32 = arith.constant 0 : i32
    %c0_i32_0 = arith.constant 0 : i32
    %c0_i32_1 = arith.constant 0 : i32
    return %c0_i32, %c0_i32_0 : i32, i32
  }
  func.func @transform_8(%arg0: i32) -> (i32, i32) {
    %c0_i32 = arith.constant 0 : i32
    %c0_i32_0 = arith.constant 0 : i32
    %c0_i32_1 = arith.constant 0 : i32
    return %c0_i32, %c0_i32_0 : i32, i32
  }
  func.func @transform_9(%arg0: i32) -> (i32, i32) {
    %c0_i32 = arith.constant 0 : i32
    %c0_i32_0 = arith.constant 0 : i32
    %c0_i32_1 = arith.constant 0 : i32
    return %c0_i32, %c0_i32_0 : i32, i32
  }
  func.func @transform_10(%arg0: i32) -> (i32, i32) {
    %c0_i32 = arith.constant 0 : i32
    %c0_i32_0 = arith.constant 0 : i32
    %c0_i32_1 = arith.constant 0 : i32
    return %c0_i32, %c0_i32_0 : i32, i32
  }
  func.func @transform_11(%arg0: i32) -> (i32, i32) {
    %c0_i32 = arith.constant 0 : i32
    %c0_i32_0 = arith.constant 0 : i32
    %c0_i32_1 = arith.constant 0 : i32
    return %c0_i32, %c0_i32_0 : i32, i32
  }
  func.func @transform_12(%arg0: i32) -> (i32, i32) {
    %c0_i32 = arith.constant 0 : i32
    %c0_i32_0 = arith.constant 0 : i32
    return %arg0, %c0_i32 : i32, i32
  }
}

</mosaic_0001>

<llo_original>
// kernel: tpu_custom_call.1
$region0: #{tpu_custom_call.1}
  #allocation0 [shape = 'u32[]', space=smem, size = 0x4, offset = 0x4, fixed_abs, tag = 'smem constant byte address 0x4 - core index']
  #allocation1 [shape = 'u32[72,128]{1,0:T(1,128)}', space=vmem, size = 0x9000, scoped, tag = 'internal scratch']
  %s0 = inlined_call_operand.vmem [shape: f32[16,8], index: 0, kind: input, shape index: {}]
  %s1 = inlined_call_operand.vmem [shape: f32[16,4], index: 1, kind: input, shape index: {}]
  %s2 = inlined_call_operand.vmem [shape: bf16[8,512], index: 2, kind: input, shape index: {}]
  %s3 = inlined_call_operand.vmem [shape: bf16[4,512], index: 3, kind: input, shape index: {}]
  %s4 = inlined_call_operand.vmem [shape: f32[1,512], index: 4, kind: input, shape index: {}]
  %s5 = inlined_call_operand.hbm [shape: bf16[256,256], index: 5, kind: input, shape index: {}]
  %s6 = inlined_call_operand.vmem [shape: f32[1,256], index: 6, kind: input, shape index: {}]
  %s7 = inlined_call_operand.hbm [shape: bf16[256,256], index: 7, kind: input, shape index: {}]
  %s8 = inlined_call_operand.vmem [shape: f32[1,256], index: 8, kind: input, shape index: {}]
  %s9 = inlined_call_operand.hbm [shape: bf16[256,128], index: 9, kind: input, shape index: {}]
  %s10 = inlined_call_operand.hbm [shape: bf16[256,128], index: 10, kind: input, shape index: {}]
  %s11 = inlined_call_operand.vmem [shape: f32[1,128], index: 11, kind: input, shape index: {}]
  %s12 = inlined_call_operand.hbm [shape: f32[16,128], index: 12, kind: output, shape index: {}]
  %s13 = sld [smem:[#allocation0]]
  $region74: #{tpu_custom_call.1} parent=0
    _
  %s15 = ssub.s32 1, %s13
  %s16 = scalar_select 0, %s15, %s13
  $region1: #{tpu_custom_call.1} parent=0
    #allocation2 [shape = 'u8[131072]{0}', space=vmem, size = 0x20000, scoped, tag = 'input window, operand 5, single buffered']
    #allocation3 [shape = 's32[1]{0}', space=sflag, size = 0x4, scoped, tag = 'scoped memory for tpu_custom_call.1']
    #allocation4 [shape = 's32[1]{0}', space=sflag, size = 0x4, scoped, tag = 'scoped memory for tpu_custom_call.1']
    #allocation5 [shape = 'u8[131072]{0}', space=vmem, size = 0x20000, scoped, tag = 'input window, operand 7, single buffered']
    #allocation6 [shape = 's32[1]{0}', space=sflag, size = 0x4, scoped, tag = 'scoped memory for tpu_custom_call.1']
    #allocation7 [shape = 'u8[65536]{0}', space=vmem, size = 0x10000, scoped, tag = 'input window, operand 9, single buffered']
    #allocation8 [shape = 'u8[65536]{0}', space=vmem, size = 0x10000, scoped, tag = 'input window, operand 10, single buffered']
    #allocation9 [shape = 's32[1]{0}', space=sflag, size = 0x4, scoped, tag = 'scoped memory for tpu_custom_call.1']
    #allocation10 [shape = 'u8[8192]{0}', space=vmem, size = 0x2000, scoped, tag = 'output window, operand 0, single buffered']
    %17 = vsyncpa [#allocation3], 0
    %18 = vsyncpa [#allocation6], 0
    %19 = vsyncpa [#allocation9], 0
    %20 = vsyncpa [#allocation4], 0
    // Predicated region
    $region2: #{tpu_custom_call.1} parent=1 // pred_check
      _
    $region3: #{tpu_custom_call.1} parent=1 // pred_check_branch
      %22 = sbr.rel (0) target = $region5
    $region4: #{tpu_custom_call.1} parent=1 // pred_region
      _
    $region5: #{tpu_custom_call.1} parent=1 // pred_fallthru
      _
    // Predicated region
    $region6: #{tpu_custom_call.1} parent=1 // pred_check
      _
    $region7: #{tpu_custom_call.1} parent=1 // pred_check_branch
      %24 = sbr.rel (0) target = $region9
    $region8: #{tpu_custom_call.1} parent=1 // pred_region
      _
    $region9: #{tpu_custom_call.1} parent=1 // pred_fallthru
      _
    // Predicated region
    $region10: #{tpu_custom_call.1} parent=1 // pred_check
      _
    $region11: #{tpu_custom_call.1} parent=1 // pred_check_branch
      %26 = sbr.rel (0) target = $region13
    $region12: #{tpu_custom_call.1} parent=1 // pred_region
      _
    $region13: #{tpu_custom_call.1} parent=1 // pred_fallthru
      _
    // Predicated region
    $region14: #{tpu_custom_call.1} parent=1 // pred_check
      _
    $region15: #{tpu_custom_call.1} parent=1 // pred_check_branch
      %28 = sbr.rel (0) target = $region17
    $region16: #{tpu_custom_call.1} parent=1 // pred_region
      _
    $region17: #{tpu_custom_call.1} parent=1 // pred_fallthru
      _
    // Predicated region
    $region18: #{tpu_custom_call.1} parent=1 // pred_check
      _
    $region19: #{tpu_custom_call.1} parent=1 // pred_check_branch
      %30 = sbr.rel (0) target = $region21
    $region20: #{tpu_custom_call.1} parent=1 // pred_region
      _
    $region21: #{tpu_custom_call.1} parent=1 // pred_fallthru
      _
    // Predicated region
    $region22: #{tpu_custom_call.1} parent=1 // pred_check
      _
    $region23: #{tpu_custom_call.1} parent=1 // pred_check_branch
      %32 = sbr.rel (0) target = $region25
    $region24: #{tpu_custom_call.1} parent=1 // pred_region
      %34 = vsyncadd [#allocation3], 0
      %s35 = sshll.u32 %s5, 4
      %s36 = int_to_ptr.hbm [resolvable:$true] %s35
      %s37 = sshll.u32 [#allocation2], 4
      %s38 = int_to_ptr.vmem [resolvable:$true] %s37
      %43 = dma.hbm_to_vmem [thread:$0]  %s36, 4096, %s38, [#allocation3], 128, 128, 8
    $region25: #{tpu_custom_call.1} parent=1 // pred_fallthru
      _
    // Predicated region
    $region26: #{tpu_custom_call.1} parent=1 // pred_check
      _
    $region27: #{tpu_custom_call.1} parent=1 // pred_check_branch
      %45 = sbr.rel (0) target = $region29
    $region28: #{tpu_custom_call.1} parent=1 // pred_region
      _
    $region29: #{tpu_custom_call.1} parent=1 // pred_fallthru
      _
    // Predicated region
    $region30: #{tpu_custom_call.1} parent=1 // pred_check
      _
    $region31: #{tpu_custom_call.1} parent=1 // pred_check_branch
      %47 = sbr.rel (0) target = $region33
    $region32: #{tpu_custom_call.1} parent=1 // pred_region
      %49 = vsyncadd [#allocation6], 0
      %s50 = sshll.u32 %s7, 4
      %s51 = int_to_ptr.hbm [resolvable:$true] %s50
      %s52 = sshll.u32 [#allocation5], 4
      %s53 = int_to_ptr.vmem [resolvable:$true] %s52
      %58 = dma.hbm_to_vmem [thread:$0]  %s51, 4096, %s53, [#allocation6], 128, 128, 8
    $region33: #{tpu_custom_call.1} parent=1 // pred_fallthru
      _
    // Predicated region
    $region34: #{tpu_custom_call.1} parent=1 // pred_check
      _
    $region35: #{tpu_custom_call.1} parent=1 // pred_check_branch
      %60 = sbr.rel (0) target = $region37
    $region36: #{tpu_custom_call.1} parent=1 // pred_region
      _
    $region37: #{tpu_custom_call.1} parent=1 // pred_fallthru
      _
    // Predicated region
    $region38: #{tpu_custom_call.1} parent=1 // pred_check
      _
    $region39: #{tpu_custom_call.1} parent=1 // pred_check_branch
      %62 = sbr.rel (0) target = $region41
    $region40: #{tpu_custom_call.1} parent=1 // pred_region
      %64 = vsyncadd [#allocation6], 0
      %s65 = sshll.u32 %s9, 4
      %s66 = int_to_ptr.hbm [resolvable:$true] %s65
      %s67 = sshll.u32 [#allocation7], 4
      %s68 = int_to_ptr.vmem [resolvable:$true] %s67
      %73 = dma.hbm_to_vmem [thread:$0]  %s66, 2048, %s68, [#allocation6], 64, 64, 4
    $region41: #{tpu_custom_call.1} parent=1 // pred_fallthru
      _
    // Predicated region
    $region42: #{tpu_custom_call.1} parent=1 // pred_check
      _
    $region43: #{tpu_custom_call.1} parent=1 // pred_check_branch
      %75 = sbr.rel (0) target = $region45
    $region44: #{tpu_custom_call.1} parent=1 // pred_region
      %77 = vsyncadd [#allocation9], 0
      %s78 = sshll.u32 %s10, 4
      %s79 = int_to_ptr.hbm [resolvable:$true] %s78
      %s80 = sshll.u32 [#allocation8], 4
      %s81 = int_to_ptr.vmem [resolvable:$true] %s80
      %86 = dma.hbm_to_vmem [thread:$0]  %s79, 2048, %s81, [#allocation9], 64, 64, 4
    $region45: #{tpu_custom_call.1} parent=1 // pred_fallthru
      _
    // Predicated region
    $region46: #{tpu_custom_call.1} parent=1 // pred_check
      _
    $region47: #{tpu_custom_call.1} parent=1 // pred_check_branch
      %88 = sbr.rel (0) target = $region49
    $region48: #{tpu_custom_call.1} parent=1 // pred_region
      _
    $region49: #{tpu_custom_call.1} parent=1 // pred_fallthru
      _
    // Predicated region
    $region50: #{tpu_custom_call.1} parent=1 // pred_check
      _
    $region51: #{tpu_custom_call.1} parent=1 // pred_check_branch
      %90 = sbr.rel (0) target = $region53
    $region52: #{tpu_custom_call.1} parent=1 // pred_region
      %92 = dma.done [#allocation3], 4096
    $region53: #{tpu_custom_call.1} parent=1 // pred_fallthru
      _
    // Predicated region
    $region54: #{tpu_custom_call.1} parent=1 // pred_check
      _
    $region55: #{tpu_custom_call.1} parent=1 // pred_check_branch
      %94 = sbr.rel (0) target = $region57
    $region56: #{tpu_custom_call.1} parent=1 // pred_region
      %96 = dma.done [#allocation6], 4096
    $region57: #{tpu_custom_call.1} parent=1 // pred_fallthru
      _
    // Predicated region
    $region58: #{tpu_custom_call.1} parent=1 // pred_check
      _
    $region59: #{tpu_custom_call.1} parent=1 // pred_check_branch
      %98 = sbr.rel (0) target = $region61
    $region60: #{tpu_custom_call.1} parent=1 // pred_region
      %100 = dma.done [#allocation6], 2048
    $region61: #{tpu_custom_call.1} parent=1 // pred_fallthru
      _
    // Predicated region
    $region62: #{tpu_custom_call.1} parent=1 // pred_check
      _
    $region63: #{tpu_custom_call.1} parent=1 // pred_check_branch
      %102 = sbr.rel (0) target = $region65
    $region64: #{tpu_custom_call.1} parent=1 // pred_region
      %104 = dma.done [#allocation9], 2048
    $region65: #{tpu_custom_call.1} parent=1 // pred_fallthru
      _
    %v106 = vld [vmem:[%s0] sm:$0xff]
    %v107 = vld [vmem:[%s0 + $0x8] sm:$0xff]
    %v108 = vpack.c.bf16 %v107, %v106
    %v109 = vld [vmem:[%s1] sm:$0xff]
    %v110 = vld [vmem:[%s1 + $0x8] sm:$0xff]
    %v111 = vpack.c.bf16 %v110, %v109
    %v112 = vld [vmem:[%s2] sm:$0xff]
    %v113 = vld [vmem:[%s2 + $0x8] sm:$0xff]
    %v114 = vld [vmem:[%s3] sm:$0xff]
    %116 = vst [vmem:[#allocation1] ss:$4 sm:$0xff] %v114
    %v117 = vld.sshfl [vmem:[#allocation1] sm:$0xff pattern:$0x73625140]
    %v118 = vld.sshfl [vmem:[#allocation1 + $0x8] sm:$0xff pattern:$0x73625140]
    %v119 = vld.sshfl [vmem:[#allocation1 + $0x10] sm:$0xff pattern:$0x73625140]
    %v120 = vld.sshfl [vmem:[#allocation1 + $0x18] sm:$0xff pattern:$0x73625140]
    %vm121 = vcmask 31744
    %v123 = vsel %vm121, %v111, 0
    %vm125 = vcmask 1041408
    %v126 = vsel %vm125, %v117, 0
    %v128 = vsel %vm125, %v118, 0
    %v130 = vsel %vm125, %v119, 0
    %v132 = vsel %vm125, %v120, 0
    %134 = vmatpush.bf16.msra.mxu0 0
    %135 = vmatpush.bf16.msra.mxu0 0
    %136 = vmatpush.bf16.msra.mxu0 0
    %137 = vmatpush.bf16.msra.mxu0 0
    %138 = vmatpush.bf16.msra.mxu0 0
    %139 = vmatpush.bf16.msra.mxu0 0
    %140 = vmatpush.bf16.msra.mxu0 0
    %141 = vmatpush.bf16.msra.mxu0 %v126
    %142 = vmatmul.bf16.gmra.mxu0 %v123
    %v143 = vpop.f32.mrf.mxu0
    %v144 = vadd.f32 0.0, %v143
    %v145 = vpop.f32.mrf.mxu0
    %v146 = vadd.f32 0.0, %v145
    %147 = vdwg.mxu0
    %148 = vmatpush.bf16.msra.mxu0 0
    %149 = vmatpush.bf16.msra.mxu0 0
    %150 = vmatpush.bf16.msra.mxu0 0
    %151 = vmatpush.bf16.msra.mxu0 0
    %152 = vmatpush.bf16.msra.mxu0 0
    %153 = vmatpush.bf16.msra.mxu0 0
    %154 = vmatpush.bf16.msra.mxu0 0
    %155 = vmatpush.bf16.msra.mxu0 %v128
    %156 = vmatmul.bf16.gmra.mxu0 %v123
    %v157 = vpop.f32.mrf.mxu0
    %v158 = vadd.f32 0.0, %v157
    %v159 = vpop.f32.mrf.mxu0
    %v160 = vadd.f32 0.0, %v159
    %161 = vdwg.mxu0
    %162 = vmatpush.bf16.msra.mxu0 0
    %163 = vmatpush.bf16.msra.mxu0 0
    %164 = vmatpush.bf16.msra.mxu0 0
    %165 = vmatpush.bf16.msra.mxu0 0
    %166 = vmatpush.bf16.msra.mxu0 0
    %167 = vmatpush.bf16.msra.mxu0 0
    %168 = vmatpush.bf16.msra.mxu0 0
    %169 = vmatpush.bf16.msra.mxu0 %v130
    %170 = vmatmul.bf16.gmra.mxu0 %v123
    %v171 = vpop.f32.mrf.mxu0
    %v172 = vadd.f32 0.0, %v171
    %v173 = vpop.f32.mrf.mxu0
    %v174 = vadd.f32 0.0, %v173
    %175 = vdwg.mxu0
    %176 = vmatpush.bf16.msra.mxu0 0
    %177 = vmatpush.bf16.msra.mxu0 0
    %178 = vmatpush.bf16.msra.mxu0 0
    %179 = vmatpush.bf16.msra.mxu0 0
    %180 = vmatpush.bf16.msra.mxu0 0
    %181 = vmatpush.bf16.msra.mxu0 0
    %182 = vmatpush.bf16.msra.mxu0 0
    %183 = vmatpush.bf16.msra.mxu0 %v132
    %184 = vmatmul.bf16.gmra.mxu0 %v123
    %v185 = vpop.f32.mrf.mxu0
    %v186 = vadd.f32 0.0, %v185
    %v187 = vpop.f32.mrf.mxu0
    %v188 = vadd.f32 0.0, %v187
    %189 = vdwg.mxu0
    %v192 = vunpack.c.l.b16 %v112
    %v193 = vunpack.c.h.b16 %v112
    %v194 = vunpack.c.l.b16 %v113
    %v195 = vunpack.c.h.b16 %v113
    %v196 = vpack.c.b16 %v192, %v192
    %v197 = vpack.c.b16 %v193, %v193
    %v198 = vpack.c.b16 %v194, %v194
    %v199 = vpack.c.b16 %v195, %v195
    %vm200 = vcmask 64512
    %v202 = vsel %vm200, %v108, 0
    %vm204 = vcmask 1043456
    %v206 = vsel %vm204, %v196, 0
    %v209 = vsel %vm204, %v197, 0
    %v212 = vsel %vm204, %v198, 0
    %v215 = vsel %vm204, %v199, 0
    %217 = vmatpush.bf16.msra.mxu0 0
    %218 = vmatpush.bf16.msra.mxu0 0
    %219 = vmatpush.bf16.msra.mxu0 0
    %220 = vmatpush.bf16.msra.mxu0 0
    %221 = vmatpush.bf16.msra.mxu0 0
    %222 = vmatpush.bf16.msra.mxu0 0
    %223 = vmatpush.bf16.msra.mxu0 0
    %224 = vmatpush.bf16.msra.mxu0 %v206
    %225 = vmatmul.bf16.gmra.mxu0 %v202
    %v226 = vpop.f32.mrf.mxu0
    %v227 = vadd.f32 %v144, %v226
    %v228 = vpop.f32.mrf.mxu0
    %v229 = vadd.f32 %v146, %v228
    %230 = vdwg.mxu0
    %231 = vmatpush.bf16.msra.mxu0 0
    %232 = vmatpush.bf16.msra.mxu0 0
    %233 = vmatpush.bf16.msra.mxu0 0
    %234 = vmatpush.bf16.msra.mxu0 0
    %235 = vmatpush.bf16.msra.mxu0 0
    %236 = vmatpush.bf16.msra.mxu0 0
    %237 = vmatpush.bf16.msra.mxu0 0
    %238 = vmatpush.bf16.msra.mxu0 %v209
    %239 = vmatmul.bf16.gmra.mxu0 %v202
    %v240 = vpop.f32.mrf.mxu0
    %v241 = vadd.f32 %v158, %v240
    %v242 = vpop.f32.mrf.mxu0
    %v243 = vadd.f32 %v160, %v242
    %244 = vdwg.mxu0
    %245 = vmatpush.bf16.msra.mxu0 0
    %246 = vmatpush.bf16.msra.mxu0 0
    %247 = vmatpush.bf16.msra.mxu0 0
    %248 = vmatpush.bf16.msra.mxu0 0
    %249 = vmatpush.bf16.msra.mxu0 0
    %250 = vmatpush.bf16.msra.mxu0 0
    %251 = vmatpush.bf16.msra.mxu0 0
    %252 = vmatpush.bf16.msra.mxu0 %v212
    %253 = vmatmul.bf16.gmra.mxu0 %v202
    %v254 = vpop.f32.mrf.mxu0
    %v255 = vadd.f32 %v172, %v254
    %v256 = vpop.f32.mrf.mxu0
    %v257 = vadd.f32 %v174, %v256
    %258 = vdwg.mxu0
    %259 = vmatpush.bf16.msra.mxu0 0
    %260 = vmatpush.bf16.msra.mxu0 0
    %261 = vmatpush.bf16.msra.mxu0 0
    %262 = vmatpush.bf16.msra.mxu0 0
    %263 = vmatpush.bf16.msra.mxu0 0
    %264 = vmatpush.bf16.msra.mxu0 0
    %265 = vmatpush.bf16.msra.mxu0 0
    %266 = vmatpush.bf16.msra.mxu0 %v215
    %267 = vmatmul.bf16.gmra.mxu0 %v202
    %v268 = vpop.f32.mrf.mxu0
    %v269 = vadd.f32 %v186, %v268
    %v270 = vpop.f32.mrf.mxu0
    %v271 = vadd.f32 %v188, %v270
    %272 = vdwg.mxu0
    %v273 = vld [vmem:[%s4] sm:$0xf]
    %v275 = vperm.slane %v273, 0
    %v276 = vperm.slane %v273, 1
    %v277 = vperm.slane %v273, 2
    %v278 = vperm.slane %v273, 3
    %v283 = vadd.f32 %v227, %v275
    %v284 = vadd.f32 %v241, %v276
    %v285 = vadd.f32 %v255, %v277
    %v286 = vadd.f32 %v269, %v278
    %v287 = vadd.f32 %v229, %v275
    %v288 = vadd.f32 %v243, %v276
    %v289 = vadd.f32 %v257, %v277
    %v290 = vadd.f32 %v271, %v278
    %v291 = vmax.f32 %v283, 0.0
    %v292 = vmax.f32 %v284, 0.0
    %v293 = vmax.f32 %v285, 0.0
    %v294 = vmax.f32 %v286, 0.0
    %v295 = vmax.f32 %v287, 0.0
    %v296 = vmax.f32 %v288, 0.0
    %v297 = vmax.f32 %v289, 0.0
    %v298 = vmax.f32 %v290, 0.0
    %v299 = vpack.c.bf16 %v295, %v291
    %v300 = vpack.c.bf16 %v296, %v292
    %v301 = vpack.c.bf16 %v297, %v293
    %v302 = vpack.c.bf16 %v298, %v294
    %v303 = vld [vmem:[#allocation2] sm:$0xff]
    %v304 = vld [vmem:[#allocation2 + $0x8] sm:$0xff]
    %v305 = vld [vmem:[#allocation2 + $0x10] sm:$0xff]
    %v306 = vld [vmem:[#allocation2 + $0x18] sm:$0xff]
    %v307 = vld [vmem:[#allocation2 + $0x20] sm:$0xff]
    %v308 = vld [vmem:[#allocation2 + $0x28] sm:$0xff]
    %v309 = vld [vmem:[#allocation2 + $0x30] sm:$0xff]
    %v310 = vld [vmem:[#allocation2 + $0x38] sm:$0xff]
    %v311 = vld [vmem:[#allocation2 + $0x40] sm:$0xff]
    %v312 = vld [vmem:[#allocation2 + $0x48] sm:$0xff]
    %v313 = vld [vmem:[#allocation2 + $0x50] sm:$0xff]
    %v314 = vld [vmem:[#allocation2 + $0x58] sm:$0xff]
    %v315 = vld [vmem:[#allocation2 + $0x60] sm:$0xff]
    %v316 = vld [vmem:[#allocation2 + $0x68] sm:$0xff]
    %v317 = vld [vmem:[#allocation2 + $0x70] sm:$0xff]
    %v318 = vld [vmem:[#allocation2 + $0x78] sm:$0xff]
    %v319 = vld [vmem:[#allocation2 + $0x80] sm:$0xff]
    %v320 = vld [vmem:[#allocation2 + $0x88] sm:$0xff]
    %v321 = vld [vmem:[#allocation2 + $0x90] sm:$0xff]
    %v322 = vld [vmem:[#allocation2 + $0x98] sm:$0xff]
    %v323 = vld [vmem:[#allocation2 + $0xa0] sm:$0xff]
    %v324 = vld [vmem:[#allocation2 + $0xa8] sm:$0xff]
    %v325 = vld [vmem:[#allocation2 + $0xb0] sm:$0xff]
    %v326 = vld [vmem:[#allocation2 + $0xb8] sm:$0xff]
    %v327 = vld [vmem:[#allocation2 + $0xc0] sm:$0xff]
    %v328 = vld [vmem:[#allocation2 + $0xc8] sm:$0xff]
    %v329 = vld [vmem:[#allocation2 + $0xd0] sm:$0xff]
    %v330 = vld [vmem:[#allocation2 + $0xd8] sm:$0xff]
    %v331 = vld [vmem:[#allocation2 + $0xe0] sm:$0xff]
    %v332 = vld [vmem:[#allocation2 + $0xe8] sm:$0xff]
    %v333 = vld [vmem:[#allocation2 + $0xf0] sm:$0xff]
    %v334 = vld [vmem:[#allocation2 + $0xf8] sm:$0xff]
    %v335 = vld [vmem:[%s6] sm:$0x3]
    %v337 = vperm.slane %v335, 0
    %v338 = vperm.slane %v335, 1
    %v373 = vunpack.c.l.b16 %v303
    %v374 = vunpack.c.h.b16 %v303
    %v375 = vunpack.c.l.b16 %v304
    %v376 = vunpack.c.h.b16 %v304
    %v377 = vunpack.c.l.b16 %v305
    %v378 = vunpack.c.h.b16 %v305
    %v379 = vunpack.c.l.b16 %v306
    %v380 = vunpack.c.h.b16 %v306
    %v381 = vunpack.c.l.b16 %v307
    %v382 = vunpack.c.h.b16 %v307
    %v383 = vunpack.c.l.b16 %v308
    %v384 = vunpack.c.h.b16 %v308
    %v385 = vunpack.c.l.b16 %v309
    %v386 = vunpack.c.h.b16 %v309
    %v387 = vunpack.c.l.b16 %v310
    %v388 = vunpack.c.h.b16 %v310
    %v389 = vunpack.c.l.b16 %v311
    %v390 = vunpack.c.h.b16 %v311
    %v391 = vunpack.c.l.b16 %v312
    %v392 = vunpack.c.h.b16 %v312
    %v393 = vunpack.c.l.b16 %v313
    %v394 = vunpack.c.h.b16 %v313
    %v395 = vunpack.c.l.b16 %v314
    %v396 = vunpack.c.h.b16 %v314
    %v397 = vunpack.c.l.b16 %v315
    %v398 = vunpack.c.h.b16 %v315
    %v399 = vunpack.c.l.b16 %v316
    %v400 = vunpack.c.h.b16 %v316
    %v401 = vunpack.c.l.b16 %v317
    %v402 = vunpack.c.h.b16 %v317
    %v403 = vunpack.c.l.b16 %v318
    %v404 = vunpack.c.h.b16 %v318
    %v405 = vunpack.c.l.b16 %v319
    %v406 = vunpack.c.h.b16 %v319
    %v407 = vunpack.c.l.b16 %v320
    %v408 = vunpack.c.h.b16 %v320
    %v409 = vunpack.c.l.b16 %v321
    %v410 = vunpack.c.h.b16 %v321
    %v411 = vunpack.c.l.b16 %v322
    %v412 = vunpack.c.h.b16 %v322
    %v413 = vunpack.c.l.b16 %v323
    %v414 = vunpack.c.h.b16 %v323
    %v415 = vunpack.c.l.b16 %v324
    %v416 = vunpack.c.h.b16 %v324
    %v417 = vunpack.c.l.b16 %v325
    %v418 = vunpack.c.h.b16 %v325
    %v419 = vunpack.c.l.b16 %v326
    %v420 = vunpack.c.h.b16 %v326
    %v421 = vunpack.c.l.b16 %v327
    %v422 = vunpack.c.h.b16 %v327
    %v423 = vunpack.c.l.b16 %v328
    %v424 = vunpack.c.h.b16 %v328
    %v425 = vunpack.c.l.b16 %v329
    %v426 = vunpack.c.h.b16 %v329
    %v427 = vunpack.c.l.b16 %v330
    %v428 = vunpack.c.h.b16 %v330
    %v429 = vunpack.c.l.b16 %v331
    %v430 = vunpack.c.h.b16 %v331
    %v431 = vunpack.c.l.b16 %v332
    %v432 = vunpack.c.h.b16 %v332
    %v433 = vunpack.c.l.b16 %v333
    %v434 = vunpack.c.h.b16 %v333
    %v435 = vunpack.c.l.b16 %v334
    %v436 = vunpack.c.h.b16 %v334
    %v437 = vpack.c.b16 %v375, %v373
    %v438 = vpack.c.b16 %v376, %v374
    %v439 = vpack.c.b16 %v379, %v377
    %v440 = vpack.c.b16 %v380, %v378
    %v441 = vpack.c.b16 %v383, %v381
    %v442 = vpack.c.b16 %v384, %v382
    %v443 = vpack.c.b16 %v387, %v385
    %v444 = vpack.c.b16 %v388, %v386
    %v445 = vpack.c.b16 %v391, %v389
    %v446 = vpack.c.b16 %v392, %v390
    %v447 = vpack.c.b16 %v395, %v393
    %v448 = vpack.c.b16 %v396, %v394
    %v449 = vpack.c.b16 %v399, %v397
    %v450 = vpack.c.b16 %v400, %v398
    %v451 = vpack.c.b16 %v403, %v401
    %v452 = vpack.c.b16 %v404, %v402
    %v453 = vpack.c.b16 %v407, %v405
    %v454 = vpack.c.b16 %v408, %v406
    %v455 = vpack.c.b16 %v411, %v409
    %v456 = vpack.c.b16 %v412, %v410
    %v457 = vpack.c.b16 %v415, %v413
    %v458 = vpack.c.b16 %v416, %v414
    %v459 = vpack.c.b16 %v419, %v417
    %v460 = vpack.c.b16 %v420, %v418
    %v461 = vpack.c.b16 %v423, %v421
    %v462 = vpack.c.b16 %v424, %v422
    %v463 = vpack.c.b16 %v427, %v425
    %v464 = vpack.c.b16 %v428, %v426
    %v465 = vpack.c.b16 %v431, %v429
    %v466 = vpack.c.b16 %v432, %v430
    %v467 = vpack.c.b16 %v435, %v433
    %v468 = vpack.c.b16 %v436, %v434
    %501 = vmatpush.bf16.msra.mxu0 %v451
    %502 = vmatpush.bf16.msra.mxu0 %v449
    %503 = vmatpush.bf16.msra.mxu0 %v447
    %504 = vmatpush.bf16.msra.mxu0 %v445
    %505 = vmatpush.bf16.msra.mxu0 %v443
    %506 = vmatpush.bf16.msra.mxu0 %v441
    %507 = vmatpush.bf16.msra.mxu0 %v439
    %508 = vmatpush.bf16.msra.mxu0 %v437
    %509 = vmatmul.bf16.gmra.mxu0 %v299
    %v510 = vpop.f32.mrf.mxu0
    %v511 = vadd.f32 %v337, %v510
    %v512 = vpop.f32.mrf.mxu0
    %v513 = vadd.f32 %v337, %v512
    %514 = vdwg.mxu0
    %515 = vmatpush.bf16.msra.mxu0 %v467
    %516 = vmatpush.bf16.msra.mxu0 %v465
    %517 = vmatpush.bf16.msra.mxu0 %v463
    %518 = vmatpush.bf16.msra.mxu0 %v461
    %519 = vmatpush.bf16.msra.mxu0 %v459
    %520 = vmatpush.bf16.msra.mxu0 %v457
    %521 = vmatpush.bf16.msra.mxu0 %v455
    %522 = vmatpush.bf16.msra.mxu0 %v453
    %523 = vmatmul.bf16.gmra.mxu0 %v300
    %v524 = vpop.f32.mrf.mxu0
    %v525 = vadd.f32 %v511, %v524
    %v526 = vpop.f32.mrf.mxu0
    %v527 = vadd.f32 %v513, %v526
    %528 = vdwg.mxu0
    %529 = vmatpush.bf16.msra.mxu0 %v452
    %530 = vmatpush.bf16.msra.mxu0 %v450
    %531 = vmatpush.bf16.msra.mxu0 %v448
    %532 = vmatpush.bf16.msra.mxu0 %v446
    %533 = vmatpush.bf16.msra.mxu0 %v444
    %534 = vmatpush.bf16.msra.mxu0 %v442
    %535 = vmatpush.bf16.msra.mxu0 %v440
    %536 = vmatpush.bf16.msra.mxu0 %v438
    %537 = vmatmul.bf16.gmra.mxu0 %v299
    %v538 = vpop.f32.mrf.mxu0
    %v539 = vadd.f32 %v338, %v538
    %v540 = vpop.f32.mrf.mxu0
    %v541 = vadd.f32 %v338, %v540
    %542 = vdwg.mxu0
    %543 = vmatpush.bf16.msra.mxu0 %v468
    %544 = vmatpush.bf16.msra.mxu0 %v466
    %545 = vmatpush.bf16.msra.mxu0 %v464
    %546 = vmatpush.bf16.msra.mxu0 %v462
    %547 = vmatpush.bf16.msra.mxu0 %v460
    %548 = vmatpush.bf16.msra.mxu0 %v458
    %549 = vmatpush.bf16.msra.mxu0 %v456
    %550 = vmatpush.bf16.msra.mxu0 %v454
    %551 = vmatmul.bf16.gmra.mxu0 %v300
    %v552 = vpop.f32.mrf.mxu0
    %v553 = vadd.f32 %v539, %v552
    %v554 = vpop.f32.mrf.mxu0
    %v555 = vadd.f32 %v541, %v554
    %556 = vdwg.mxu0
    %v557 = vmax.f32 %v525, 0.0
    %v558 = vmax.f32 %v553, 0.0
    %v559 = vmax.f32 %v527, 0.0
    %v560 = vmax.f32 %v555, 0.0
    %v561 = vld [vmem:[#allocation5] sm:$0xff]
    %v562 = vld [vmem:[#allocation5 + $0x8] sm:$0xff]
    %v563 = vld [vmem:[#allocation5 + $0x10] sm:$0xff]
    %v564 = vld [vmem:[#allocation5 + $0x18] sm:$0xff]
    %v565 = vld [vmem:[#allocation5 + $0x20] sm:$0xff]
    %v566 = vld [vmem:[#allocation5 + $0x28] sm:$0xff]
    %v567 = vld [vmem:[#allocation5 + $0x30] sm:$0xff]
    %v568 = vld [vmem:[#allocation5 + $0x38] sm:$0xff]
    %v569 = vld [vmem:[#allocation5 + $0x40] sm:$0xff]
    %v570 = vld [vmem:[#allocation5 + $0x48] sm:$0xff]
    %v571 = vld [vmem:[#allocation5 + $0x50] sm:$0xff]
    %v572 = vld [vmem:[#allocation5 + $0x58] sm:$0xff]
    %v573 = vld [vmem:[#allocation5 + $0x60] sm:$0xff]
    %v574 = vld [vmem:[#allocation5 + $0x68] sm:$0xff]
    %v575 = vld [vmem:[#allocation5 + $0x70] sm:$0xff]
    %v576 = vld [vmem:[#allocation5 + $0x78] sm:$0xff]
    %v577 = vld [vmem:[#allocation5 + $0x80] sm:$0xff]
    %v578 = vld [vmem:[#allocation5 + $0x88] sm:$0xff]
    %v579 = vld [vmem:[#allocation5 + $0x90] sm:$0xff]
    %v580 = vld [vmem:[#allocation5 + $0x98] sm:$0xff]
    %v581 = vld [vmem:[#allocation5 + $0xa0] sm:$0xff]
    %v582 = vld [vmem:[#allocation5 + $0xa8] sm:$0xff]
    %v583 = vld [vmem:[#allocation5 + $0xb0] sm:$0xff]
    %v584 = vld [vmem:[#allocation5 + $0xb8] sm:$0xff]
    %v585 = vld [vmem:[#allocation5 + $0xc0] sm:$0xff]
    %v586 = vld [vmem:[#allocation5 + $0xc8] sm:$0xff]
    %v587 = vld [vmem:[#allocation5 + $0xd0] sm:$0xff]
    %v588 = vld [vmem:[#allocation5 + $0xd8] sm:$0xff]
    %v589 = vld [vmem:[#allocation5 + $0xe0] sm:$0xff]
    %v590 = vld [vmem:[#allocation5 + $0xe8] sm:$0xff]
    %v591 = vld [vmem:[#allocation5 + $0xf0] sm:$0xff]
    %v592 = vld [vmem:[#allocation5 + $0xf8] sm:$0xff]
    %v593 = vld [vmem:[%s8] sm:$0x3]
    %v595 = vperm.slane %v593, 0
    %v596 = vperm.slane %v593, 1
    %v631 = vunpack.c.l.b16 %v561
    %v632 = vunpack.c.h.b16 %v561
    %v633 = vunpack.c.l.b16 %v562
    %v634 = vunpack.c.h.b16 %v562
    %v635 = vunpack.c.l.b16 %v563
    %v636 = vunpack.c.h.b16 %v563
    %v637 = vunpack.c.l.b16 %v564
    %v638 = vunpack.c.h.b16 %v564
    %v639 = vunpack.c.l.b16 %v565
    %v640 = vunpack.c.h.b16 %v565
    %v641 = vunpack.c.l.b16 %v566
    %v642 = vunpack.c.h.b16 %v566
    %v643 = vunpack.c.l.b16 %v567
    %v644 = vunpack.c.h.b16 %v567
    %v645 = vunpack.c.l.b16 %v568
    %v646 = vunpack.c.h.b16 %v568
    %v647 = vunpack.c.l.b16 %v569
    %v648 = vunpack.c.h.b16 %v569
    %v649 = vunpack.c.l.b16 %v570
    %v650 = vunpack.c.h.b16 %v570
    %v651 = vunpack.c.l.b16 %v571
    %v652 = vunpack.c.h.b16 %v571
    %v653 = vunpack.c.l.b16 %v572
    %v654 = vunpack.c.h.b16 %v572
    %v655 = vunpack.c.l.b16 %v573
    %v656 = vunpack.c.h.b16 %v573
    %v657 = vunpack.c.l.b16 %v574
    %v658 = vunpack.c.h.b16 %v574
    %v659 = vunpack.c.l.b16 %v575
    %v660 = vunpack.c.h.b16 %v575
    %v661 = vunpack.c.l.b16 %v576
    %v662 = vunpack.c.h.b16 %v576
    %v663 = vunpack.c.l.b16 %v577
    %v664 = vunpack.c.h.b16 %v577
    %v665 = vunpack.c.l.b16 %v578
    %v666 = vunpack.c.h.b16 %v578
    %v667 = vunpack.c.l.b16 %v579
    %v668 = vunpack.c.h.b16 %v579
    %v669 = vunpack.c.l.b16 %v580
    %v670 = vunpack.c.h.b16 %v580
    %v671 = vunpack.c.l.b16 %v581
    %v672 = vunpack.c.h.b16 %v581
    %v673 = vunpack.c.l.b16 %v582
    %v674 = vunpack.c.h.b16 %v582
    %v675 = vunpack.c.l.b16 %v583
    %v676 = vunpack.c.h.b16 %v583
    %v677 = vunpack.c.l.b16 %v584
    %v678 = vunpack.c.h.b16 %v584
    %v679 = vunpack.c.l.b16 %v585
    %v680 = vunpack.c.h.b16 %v585
    %v681 = vunpack.c.l.b16 %v586
    %v682 = vunpack.c.h.b16 %v586
    %v683 = vunpack.c.l.b16 %v587
    %v684 = vunpack.c.h.b16 %v587
    %v685 = vunpack.c.l.b16 %v588
    %v686 = vunpack.c.h.b16 %v588
    %v687 = vunpack.c.l.b16 %v589
    %v688 = vunpack.c.h.b16 %v589
    %v689 = vunpack.c.l.b16 %v590
    %v690 = vunpack.c.h.b16 %v590
    %v691 = vunpack.c.l.b16 %v591
    %v692 = vunpack.c.h.b16 %v591
    %v693 = vunpack.c.l.b16 %v592
    %v694 = vunpack.c.h.b16 %v592
    %v695 = vpack.c.b16 %v633, %v631
    %v696 = vpack.c.b16 %v634, %v632
    %v697 = vpack.c.b16 %v637, %v635
    %v698 = vpack.c.b16 %v638, %v636
    %v699 = vpack.c.b16 %v641, %v639
    %v700 = vpack.c.b16 %v642, %v640
    %v701 = vpack.c.b16 %v645, %v643
    %v702 = vpack.c.b16 %v646, %v644
    %v703 = vpack.c.b16 %v649, %v647
    %v704 = vpack.c.b16 %v650, %v648
    %v705 = vpack.c.b16 %v653, %v651
    %v706 = vpack.c.b16 %v654, %v652
    %v707 = vpack.c.b16 %v657, %v655
    %v708 = vpack.c.b16 %v658, %v656
    %v709 = vpack.c.b16 %v661, %v659
    %v710 = vpack.c.b16 %v662, %v660
    %v711 = vpack.c.b16 %v665, %v663
    %v712 = vpack.c.b16 %v666, %v664
    %v713 = vpack.c.b16 %v669, %v667
    %v714 = vpack.c.b16 %v670, %v668
    %v715 = vpack.c.b16 %v673, %v671
    %v716 = vpack.c.b16 %v674, %v672
    %v717 = vpack.c.b16 %v677, %v675
    %v718 = vpack.c.b16 %v678, %v676
    %v719 = vpack.c.b16 %v681, %v679
    %v720 = vpack.c.b16 %v682, %v680
    %v721 = vpack.c.b16 %v685, %v683
    %v722 = vpack.c.b16 %v686, %v684
    %v723 = vpack.c.b16 %v689, %v687
    %v724 = vpack.c.b16 %v690, %v688
    %v725 = vpack.c.b16 %v693, %v691
    %v726 = vpack.c.b16 %v694, %v692
    %759 = vmatpush.bf16.msra.mxu0 %v709
    %760 = vmatpush.bf16.msra.mxu0 %v707
    %761 = vmatpush.bf16.msra.mxu0 %v705
    %762 = vmatpush.bf16.msra.mxu0 %v703
    %763 = vmatpush.bf16.msra.mxu0 %v701
    %764 = vmatpush.bf16.msra.mxu0 %v699
    %765 = vmatpush.bf16.msra.mxu0 %v697
    %766 = vmatpush.bf16.msra.mxu0 %v695
    %767 = vmatmul.bf16.gmra.mxu0 %v301
    %v768 = vpop.f32.mrf.mxu0
    %v769 = vadd.f32 %v595, %v768
    %v770 = vpop.f32.mrf.mxu0
    %v771 = vadd.f32 %v595, %v770
    %772 = vdwg.mxu0
    %773 = vmatpush.bf16.msra.mxu0 %v725
    %774 = vmatpush.bf16.msra.mxu0 %v723
    %775 = vmatpush.bf16.msra.mxu0 %v721
    %776 = vmatpush.bf16.msra.mxu0 %v719
    %777 = vmatpush.bf16.msra.mxu0 %v717
    %778 = vmatpush.bf16.msra.mxu0 %v715
    %779 = vmatpush.bf16.msra.mxu0 %v713
    %780 = vmatpush.bf16.msra.mxu0 %v711
    %781 = vmatmul.bf16.gmra.mxu0 %v302
    %v782 = vpop.f32.mrf.mxu0
    %v783 = vadd.f32 %v769, %v782
    %v784 = vpop.f32.mrf.mxu0
    %v785 = vadd.f32 %v771, %v784
    %786 = vdwg.mxu0
    %787 = vmatpush.bf16.msra.mxu0 %v710
    %788 = vmatpush.bf16.msra.mxu0 %v708
    %789 = vmatpush.bf16.msra.mxu0 %v706
    %790 = vmatpush.bf16.msra.mxu0 %v704
    %791 = vmatpush.bf16.msra.mxu0 %v702
    %792 = vmatpush.bf16.msra.mxu0 %v700
    %793 = vmatpush.bf16.msra.mxu0 %v698
    %794 = vmatpush.bf16.msra.mxu0 %v696
    %795 = vmatmul.bf16.gmra.mxu0 %v301
    %v796 = vpop.f32.mrf.mxu0
    %v797 = vadd.f32 %v596, %v796
    %v798 = vpop.f32.mrf.mxu0
    %v799 = vadd.f32 %v596, %v798
    %800 = vdwg.mxu0
    %801 = vmatpush.bf16.msra.mxu0 %v726
    %802 = vmatpush.bf16.msra.mxu0 %v724
    %803 = vmatpush.bf16.msra.mxu0 %v722
    %804 = vmatpush.bf16.msra.mxu0 %v720
    %805 = vmatpush.bf16.msra.mxu0 %v718
    %806 = vmatpush.bf16.msra.mxu0 %v716
    %807 = vmatpush.bf16.msra.mxu0 %v714
    %808 = vmatpush.bf16.msra.mxu0 %v712
    %809 = vmatmul.bf16.gmra.mxu0 %v302
    %v810 = vpop.f32.mrf.mxu0
    %v811 = vadd.f32 %v797, %v810
    %v812 = vpop.f32.mrf.mxu0
    %v813 = vadd.f32 %v799, %v812
    %814 = vdwg.mxu0
    %v815 = vmax.f32 %v783, 0.0
    %v816 = vmax.f32 %v811, 0.0
    %v817 = vmax.f32 %v785, 0.0
    %v818 = vmax.f32 %v813, 0.0
    %v819 = vpack.c.bf16 %v559, %v557
    %v820 = vpack.c.bf16 %v560, %v558
    %v821 = vld [vmem:[#allocation7] sm:$0xf]
    %v822 = vld [vmem:[#allocation7 + $0x4] sm:$0xf]
    %v823 = vld [vmem:[#allocation7 + $0x8] sm:$0xf]
    %v824 = vld [vmem:[#allocation7 + $0xc] sm:$0xf]
    %v825 = vld [vmem:[#allocation7 + $0x10] sm:$0xf]
    %v826 = vld [vmem:[#allocation7 + $0x14] sm:$0xf]
    %v827 = vld [vmem:[#allocation7 + $0x18] sm:$0xf]
    %v828 = vld [vmem:[#allocation7 + $0x1c] sm:$0xf]
    %v829 = vld [vmem:[#allocation7 + $0x20] sm:$0xf]
    %v830 = vld [vmem:[#allocation7 + $0x24] sm:$0xf]
    %v831 = vld [vmem:[#allocation7 + $0x28] sm:$0xf]
    %v832 = vld [vmem:[#allocation7 + $0x2c] sm:$0xf]
    %v833 = vld [vmem:[#allocation7 + $0x30] sm:$0xf]
    %v834 = vld [vmem:[#allocation7 + $0x34] sm:$0xf]
    %v835 = vld [vmem:[#allocation7 + $0x38] sm:$0xf]
    %v836 = vld [vmem:[#allocation7 + $0x3c] sm:$0xf]
    %v837 = vld [vmem:[#allocation7 + $0x40] sm:$0xf]
    %v838 = vld [vmem:[#allocation7 + $0x44] sm:$0xf]
    %v839 = vld [vmem:[#allocation7 + $0x48] sm:$0xf]
    %v840 = vld [vmem:[#allocation7 + $0x4c] sm:$0xf]
    %v841 = vld [vmem:[#allocation7 + $0x50] sm:$0xf]
    %v842 = vld [vmem:[#allocation7 + $0x54] sm:$0xf]
    %v843 = vld [vmem:[#allocation7 + $0x58] sm:$0xf]
    %v844 = vld [vmem:[#allocation7 + $0x5c] sm:$0xf]
    %v845 = vld [vmem:[#allocation7 + $0x60] sm:$0xf]
    %v846 = vld [vmem:[#allocation7 + $0x64] sm:$0xf]
    %v847 = vld [vmem:[#allocation7 + $0x68] sm:$0xf]
    %v848 = vld [vmem:[#allocation7 + $0x6c] sm:$0xf]
    %v849 = vld [vmem:[#allocation7 + $0x70] sm:$0xf]
    %v850 = vld [vmem:[#allocation7 + $0x74] sm:$0xf]
    %v851 = vld [vmem:[#allocation7 + $0x78] sm:$0xf]
    %v852 = vld [vmem:[#allocation7 + $0x7c] sm:$0xf]
    %v853 = vpack.c.bf16 %v817, %v815
    %v854 = vpack.c.bf16 %v818, %v816
    %v855 = vld [vmem:[#allocation8] sm:$0xf]
    %v856 = vld [vmem:[#allocation8 + $0x4] sm:$0xf]
    %v857 = vld [vmem:[#allocation8 + $0x8] sm:$0xf]
    %v858 = vld [vmem:[#allocation8 + $0xc] sm:$0xf]
    %v859 = vld [vmem:[#allocation8 + $0x10] sm:$0xf]
    %v860 = vld [vmem:[#allocation8 + $0x14] sm:$0xf]
    %v861 = vld [vmem:[#allocation8 + $0x18] sm:$0xf]
    %v862 = vld [vmem:[#allocation8 + $0x1c] sm:$0xf]
    %v863 = vld [vmem:[#allocation8 + $0x20] sm:$0xf]
    %v864 = vld [vmem:[#allocation8 + $0x24] sm:$0xf]
    %v865 = vld [vmem:[#allocation8 + $0x28] sm:$0xf]
    %v866 = vld [vmem:[#allocation8 + $0x2c] sm:$0xf]
    %v867 = vld [vmem:[#allocation8 + $0x30] sm:$0xf]
    %v868 = vld [vmem:[#allocation8 + $0x34] sm:$0xf]
    %v869 = vld [vmem:[#allocation8 + $0x38] sm:$0xf]
    %v870 = vld [vmem:[#allocation8 + $0x3c] sm:$0xf]
    %v871 = vld [vmem:[#allocation8 + $0x40] sm:$0xf]
    %v872 = vld [vmem:[#allocation8 + $0x44] sm:$0xf]
    %v873 = vld [vmem:[#allocation8 + $0x48] sm:$0xf]
    %v874 = vld [vmem:[#allocation8 + $0x4c] sm:$0xf]
    %v875 = vld [vmem:[#allocation8 + $0x50] sm:$0xf]
    %v876 = vld [vmem:[#allocation8 + $0x54] sm:$0xf]
    %v877 = vld [vmem:[#allocation8 + $0x58] sm:$0xf]
    %v878 = vld [vmem:[#allocation8 + $0x5c] sm:$0xf]
    %v879 = vld [vmem:[#allocation8 + $0x60] sm:$0xf]
    %v880 = vld [vmem:[#allocation8 + $0x64] sm:$0xf]
    %v881 = vld [vmem:[#allocation8 + $0x68] sm:$0xf]
    %v882 = vld [vmem:[#allocation8 + $0x6c] sm:$0xf]
    %v883 = vld [vmem:[#allocation8 + $0x70] sm:$0xf]
    %v884 = vld [vmem:[#allocation8 + $0x74] sm:$0xf]
    %v885 = vld [vmem:[#allocation8 + $0x78] sm:$0xf]
    %v886 = vld [vmem:[#allocation8 + $0x7c] sm:$0xf]
    %v919 = vunpack.c.l.b16 %v855
    %v920 = vunpack.c.l.b16 %v856
    %v921 = vunpack.c.l.b16 %v857
    %v922 = vunpack.c.l.b16 %v858
    %v923 = vunpack.c.l.b16 %v859
    %v924 = vunpack.c.l.b16 %v860
    %v925 = vunpack.c.l.b16 %v861
    %v926 = vunpack.c.l.b16 %v862
    %v927 = vunpack.c.l.b16 %v863
    %v928 = vunpack.c.l.b16 %v864
    %v929 = vunpack.c.l.b16 %v865
    %v930 = vunpack.c.l.b16 %v866
    %v931 = vunpack.c.l.b16 %v867
    %v932 = vunpack.c.l.b16 %v868
    %v933 = vunpack.c.l.b16 %v869
    %v934 = vunpack.c.l.b16 %v870
    %v935 = vunpack.c.l.b16 %v871
    %v936 = vunpack.c.l.b16 %v872
    %v937 = vunpack.c.l.b16 %v873
    %v938 = vunpack.c.l.b16 %v874
    %v939 = vunpack.c.l.b16 %v875
    %v940 = vunpack.c.l.b16 %v876
    %v941 = vunpack.c.l.b16 %v877
    %v942 = vunpack.c.l.b16 %v878
    %v943 = vunpack.c.l.b16 %v879
    %v944 = vunpack.c.l.b16 %v880
    %v945 = vunpack.c.l.b16 %v881
    %v946 = vunpack.c.l.b16 %v882
    %v947 = vunpack.c.l.b16 %v883
    %v948 = vunpack.c.l.b16 %v884
    %v949 = vunpack.c.l.b16 %v885
    %v950 = vunpack.c.l.b16 %v886
    %v951 = vpack.c.b16 %v920, %v919
    %v952 = vpack.c.b16 %v922, %v921
    %v953 = vpack.c.b16 %v924, %v923
    %v954 = vpack.c.b16 %v926, %v925
    %v955 = vpack.c.b16 %v928, %v927
    %v956 = vpack.c.b16 %v930, %v929
    %v957 = vpack.c.b16 %v932, %v931
    %v958 = vpack.c.b16 %v934, %v933
    %v959 = vpack.c.b16 %v936, %v935
    %v960 = vpack.c.b16 %v938, %v937
    %v961 = vpack.c.b16 %v940, %v939
    %v962 = vpack.c.b16 %v942, %v941
    %v963 = vpack.c.b16 %v944, %v943
    %v964 = vpack.c.b16 %v946, %v945
    %v965 = vpack.c.b16 %v948, %v947
    %v966 = vpack.c.b16 %v950, %v949
    %983 = vmatpush.bf16.msra.mxu0 %v958
    %984 = vmatpush.bf16.msra.mxu0 %v957
    %985 = vmatpush.bf16.msra.mxu0 %v956
    %986 = vmatpush.bf16.msra.mxu0 %v955
    %987 = vmatpush.bf16.msra.mxu0 %v954
    %988 = vmatpush.bf16.msra.mxu0 %v953
    %989 = vmatpush.bf16.msra.mxu0 %v952
    %990 = vmatpush.bf16.msra.mxu0 %v951
    %991 = vmatmul.bf16.gmra.mxu0 %v853
    %v992 = vpop.f32.mrf.mxu0
    %v993 = vadd.f32 0.0, %v992
    %v994 = vpop.f32.mrf.mxu0
    %v995 = vadd.f32 0.0, %v994
    %996 = vdwg.mxu0
    %997 = vmatpush.bf16.msra.mxu0 %v966
    %998 = vmatpush.bf16.msra.mxu0 %v965
    %999 = vmatpush.bf16.msra.mxu0 %v964
    %1000 = vmatpush.bf16.msra.mxu0 %v963
    %1001 = vmatpush.bf16.msra.mxu0 %v962
    %1002 = vmatpush.bf16.msra.mxu0 %v961
    %1003 = vmatpush.bf16.msra.mxu0 %v960
    %1004 = vmatpush.bf16.msra.mxu0 %v959
    %1005 = vmatmul.bf16.gmra.mxu0 %v854
    %v1006 = vpop.f32.mrf.mxu0
    %v1007 = vadd.f32 %v993, %v1006
    %v1008 = vpop.f32.mrf.mxu0
    %v1009 = vadd.f32 %v995, %v1008
    %1010 = vdwg.mxu0
    %v1043 = vunpack.c.l.b16 %v821
    %v1044 = vunpack.c.l.b16 %v822
    %v1045 = vunpack.c.l.b16 %v823
    %v1046 = vunpack.c.l.b16 %v824
    %v1047 = vunpack.c.l.b16 %v825
    %v1048 = vunpack.c.l.b16 %v826
    %v1049 = vunpack.c.l.b16 %v827
    %v1050 = vunpack.c.l.b16 %v828
    %v1051 = vunpack.c.l.b16 %v829
    %v1052 = vunpack.c.l.b16 %v830
    %v1053 = vunpack.c.l.b16 %v831
    %v1054 = vunpack.c.l.b16 %v832
    %v1055 = vunpack.c.l.b16 %v833
    %v1056 = vunpack.c.l.b16 %v834
    %v1057 = vunpack.c.l.b16 %v835
    %v1058 = vunpack.c.l.b16 %v836
    %v1059 = vunpack.c.l.b16 %v837
    %v1060 = vunpack.c.l.b16 %v838
    %v1061 = vunpack.c.l.b16 %v839
    %v1062 = vunpack.c.l.b16 %v840
    %v1063 = vunpack.c.l.b16 %v841
    %v1064 = vunpack.c.l.b16 %v842
    %v1065 = vunpack.c.l.b16 %v843
    %v1066 = vunpack.c.l.b16 %v844
    %v1067 = vunpack.c.l.b16 %v845
    %v1068 = vunpack.c.l.b16 %v846
    %v1069 = vunpack.c.l.b16 %v847
    %v1070 = vunpack.c.l.b16 %v848
    %v1071 = vunpack.c.l.b16 %v849
    %v1072 = vunpack.c.l.b16 %v850
    %v1073 = vunpack.c.l.b16 %v851
    %v1074 = vunpack.c.l.b16 %v852
    %v1075 = vpack.c.b16 %v1044, %v1043
    %v1076 = vpack.c.b16 %v1046, %v1045
    %v1077 = vpack.c.b16 %v1048, %v1047
    %v1078 = vpack.c.b16 %v1050, %v1049
    %v1079 = vpack.c.b16 %v1052, %v1051
    %v1080 = vpack.c.b16 %v1054, %v1053
    %v1081 = vpack.c.b16 %v1056, %v1055
    %v1082 = vpack.c.b16 %v1058, %v1057
    %v1083 = vpack.c.b16 %v1060, %v1059
    %v1084 = vpack.c.b16 %v1062, %v1061
    %v1085 = vpack.c.b16 %v1064, %v1063
    %v1086 = vpack.c.b16 %v1066, %v1065
    %v1087 = vpack.c.b16 %v1068, %v1067
    %v1088 = vpack.c.b16 %v1070, %v1069
    %v1089 = vpack.c.b16 %v1072, %v1071
    %v1090 = vpack.c.b16 %v1074, %v1073
    %1107 = vmatpush.bf16.msra.mxu0 %v1082
    %1108 = vmatpush.bf16.msra.mxu0 %v1081
    %1109 = vmatpush.bf16.msra.mxu0 %v1080
    %1110 = vmatpush.bf16.msra.mxu0 %v1079
    %1111 = vmatpush.bf16.msra.mxu0 %v1078
    %1112 = vmatpush.bf16.msra.mxu0 %v1077
    %1113 = vmatpush.bf16.msra.mxu0 %v1076
    %1114 = vmatpush.bf16.msra.mxu0 %v1075
    %1115 = vmatmul.bf16.gmra.mxu0 %v819
    %v1116 = vpop.f32.mrf.mxu0
    %v1117 = vadd.f32 %v1007, %v1116
    %v1118 = vpop.f32.mrf.mxu0
    %v1119 = vadd.f32 %v1009, %v1118
    %1120 = vdwg.mxu0
    %1121 = vmatpush.bf16.msra.mxu0 %v1090
    %1122 = vmatpush.bf16.msra.mxu0 %v1089
    %1123 = vmatpush.bf16.msra.mxu0 %v1088
    %1124 = vmatpush.bf16.msra.mxu0 %v1087
    %1125 = vmatpush.bf16.msra.mxu0 %v1086
    %1126 = vmatpush.bf16.msra.mxu0 %v1085
    %1127 = vmatpush.bf16.msra.mxu0 %v1084
    %1128 = vmatpush.bf16.msra.mxu0 %v1083
    %1129 = vmatmul.bf16.gmra.mxu0 %v820
    %v1130 = vpop.f32.mrf.mxu0
    %v1131 = vadd.f32 %v1117, %v1130
    %v1132 = vpop.f32.mrf.mxu0
    %v1133 = vadd.f32 %v1119, %v1132
    %1134 = vdwg.mxu0
    %v1135 = vld [vmem:[%s11] sm:$0x1]
    %v1137 = vperm.slane %v1135, 0
    %v1139 = vadd.f32 %v1131, %v1137
    %v1140 = vadd.f32 %v1133, %v1137
    %1141 = vst [vmem:[#allocation10] sm:$0xff] %v1139
    %1142 = vst [vmem:[#allocation10 + $0x8] sm:$0xff] %v1140
    // Predicated region
    $region66: #{tpu_custom_call.1} parent=1 // pred_check
      _
    $region67: #{tpu_custom_call.1} parent=1 // pred_check_branch
      %1144 = sbr.rel (0) target = $region69
    $region68: #{tpu_custom_call.1} parent=1 // pred_region
      %1146 = vsyncadd [#allocation4], 0
      %s1147 = sshll.u32 [#allocation10], 4
      %s1148 = int_to_ptr.vmem [resolvable:$true] %s1147
      %s1149 = sshll.u32 %s12, 4
      %s1150 = int_to_ptr.hbm [resolvable:$true] %s1149
      %1155 = dma.vmem_to_hbm [thread:$0]  %s1148, 256, %s1150, [#allocation4], 128, 128, 8
    $region69: #{tpu_custom_call.1} parent=1 // pred_fallthru
      _
    // Predicated region
    $region70: #{tpu_custom_call.1} parent=1 // pred_check
      _
    $region71: #{tpu_custom_call.1} parent=1 // pred_check_branch
      %1157 = sbr.rel (0) target = $region73
    $region72: #{tpu_custom_call.1} parent=1 // pred_region
      %1159 = dma.done [#allocation4], 256
    $region73: #{tpu_custom_call.1} parent=1 // pred_fallthru
      _
    %1160 = vsyncpa [#allocation3], 1
    %1161 = vsyncpa [#allocation6], 1
    %1162 = vsyncpa [#allocation9], 1
    %1163 = vsyncpa [#allocation4], 1

</llo_original>
